<compile_context>
chip_gen: v7x
topology: tpu7x:2x2x1
jax: 0.10.0
libtpu: 0.0.40
codegen_flags: <defaults>
</compile_context>

<pallas_src>
import functools

import jax
import jax.numpy as jnp
from jax.experimental import pallas as pl
from jax.experimental.pallas import tpu as pltpu


def _boost_soft_kernel(preds_ref, tgt_ref, out_ref, *,
                       n_rows, row_tile, padding_idx, on_c, off_c,
                       one_minus_beta, clamp_soft):
    i = pl.program_id(0)

    x = preds_ref[...].astype(jnp.float32)            # (R, V), in-kernel cast
    tgt = tgt_ref[...]                                 # (R, 1) int32
    R, V = x.shape

    # --- softmax pieces: one exp + one log per element, total ----------------
    m = jnp.max(x, axis=-1, keepdims=True)             # (R, 1)
    xs = x - m                                         # (R, V)
    e = jnp.exp(xs)                                    # (R, V)
    s = jnp.sum(e, axis=-1, keepdims=True)             # (R, 1)
    log_s = jnp.log(s)                                 # (R, 1)
    # (1 - beta) / s folded into a single per-row factor: softmax itself is
    # never materialized.
    scale = pl.reciprocal(s, approx=True) * jnp.float32(one_minus_beta)

    # --- ignore mask (padding target or out-of-range tail rows of the block) -
    row = jax.lax.broadcasted_iota(jnp.int32, (R, 1), 0) + i * row_tile
    ignore = jnp.logical_or(tgt == padding_idx, row >= n_rows)   # (R, 1)
    tgt_safe = jnp.where(ignore, 0, tgt)

    # soft = beta*true_dist + (1-beta)*softmax, with beta folded into constants.
    col = jax.lax.broadcasted_iota(jnp.int32, (R, V), 1)
    soft = (jnp.where(col == tgt_safe, jnp.float32(on_c), jnp.float32(off_c))
            + e * scale)
    if clamp_soft:
        # Only emitted when a smoothed constant can be ~0 (alpha == 0 / 1 or
        # degenerate beta); guards log(0) where the PyTorch reference would NaN.
        soft = jnp.maximum(soft, jnp.float32(1e-30))

    # Per-row KLDiv sum:
    #   sum_V soft*(log(soft) - logp) = sum_V soft*(log(soft) - xs) + log(s)
    # because sum_V soft == 1 and logp = xs - log(s).
    row_kl = jnp.sum(soft * (jnp.log(soft) - xs), axis=-1, keepdims=True) + log_s
    # Select (never multiply-by-mask) so NaN/Inf from garbage tail rows dies.
    row_kl = jnp.where(ignore, 0.0, row_kl)

    out_ref[...] = jnp.reshape(jnp.sum(row_kl), (1, 1, 1))


def _vmem_capacity_bytes():
    try:
        return int(pltpu.get_tpu_info().vmem_capacity_bytes)
    except Exception:
        return 64 * 1024 * 1024        # conservative (v7x-sized) fallback


def _dimension_semantics(num_blocks):
    # "parallel" vs "arbitrary" barely changes codegen; only CORE_PARALLEL
    # actually splits a grid axis across TensorCores.  Use it on multi-core
    # chips (v7x), where this EUP/VPU-bound kernel gains up to ~2x.
    if num_blocks >= 2:
        try:
            kind = jax.devices()[0].device_kind.lower()
        except Exception:
            kind = ""
        if "v7" in kind or "7x" in kind:
            return (pltpu.CORE_PARALLEL,)
    return (pltpu.PARALLEL,)


def boost_soft_forward(preds, target, *, ignore_index, alpha,
                       normalize_length=True, beta=0.95, row_tile=None):
    """preds: (B, T, V) float32/bfloat16, target: (B, T) int. Returns scalar loss."""
    B, T, V = preds.shape
    confidence = 1.0 - alpha
    smoothing = alpha
    on_c = beta * confidence
    off_c = beta * smoothing / max(V - 1, 1)
    clamp_soft = min(on_c, off_c) < 1e-30

    preds2 = preds.reshape(-1, V)                    # (N, V) -- no pad, no cast
    tgt2 = target.reshape(-1, 1).astype(jnp.int32)   # (N, 1)
    N = preds2.shape[0]

    # Sublane granularity for the input dtype (f32:8, bf16:16, int8/fp8:32).
    itemsize = jnp.dtype(preds2.dtype).itemsize
    sub = {4: 8, 2: 16, 1: 32}.get(itemsize, 8)

    # Generation-aware sizing: v7x has 64 MiB VMEM per TensorCore, v5e/v6e 128.
    vmem_cap = _vmem_capacity_bytes()
    if vmem_cap <= 64 * 1024 * 1024:
        budget_bytes = 2 * 1024 * 1024               # f32-equiv input block
        vmem_limit = 40 * 1024 * 1024
    else:
        budget_bytes = 6 * 1024 * 1024
        vmem_limit = 64 * 1024 * 1024

    if row_tile is None:
        row_tile = max(sub, min(8192, budget_bytes // (V * 4)))
    row_tile = max(sub, (row_tile // sub) * sub)
    # Never taller than the (sublane-padded) row count.
    row_tile = min(row_tile, ((N + sub - 1) // sub) * sub)

    num_blocks = pl.cdiv(N, row_tile)
    kernel = functools.partial(
        _boost_soft_kernel,
        n_rows=int(N), row_tile=int(row_tile),
        padding_idx=int(ignore_index),
        on_c=float(on_c), off_c=float(off_c),
        one_minus_beta=float(1.0 - beta),
        clamp_soft=bool(clamp_soft),
    )

    partials = pl.pallas_call(
        kernel,
        out_shape=jax.ShapeDtypeStruct((num_blocks, 1, 1), jnp.float32),
        grid_spec=pltpu.PrefetchScalarGridSpec(
            num_scalar_prefetch=0,
            grid=(num_blocks,),
            in_specs=[
                pl.BlockSpec((row_tile, V), lambda i: (i, 0)),
                pl.BlockSpec((row_tile, 1), lambda i: (i, 0)),
            ],
            out_specs=pl.BlockSpec((1, 1, 1), lambda i: (i, 0, 0)),
        ),
        compiler_params=pltpu.CompilerParams(
            dimension_semantics=_dimension_semantics(num_blocks),
            vmem_limit_bytes=vmem_limit,
        ),
    )(preds2, tgt2)

    kl_sum = jnp.sum(partials)

    # Scalar denominator (plain-JAX glue, negligible).
    total = jnp.sum((target.reshape(-1) != ignore_index).astype(jnp.float32))
    denom = total if normalize_length else jnp.float32(B)
    return kl_sum / denom


def _reference(preds, target, *, ignore_index, alpha,
               normalize_length=True, beta=0.95):
    B, T, V = preds.shape
    confidence = 1.0 - alpha
    smoothing = alpha
    p2 = preds.reshape(-1, V).astype(jnp.float32)
    t2 = target.reshape(-1)
    sm = jax.nn.softmax(p2, axis=-1)
    logp = jax.nn.log_softmax(p2, axis=-1)
    ignore = t2 == ignore_index
    t_safe = jnp.where(ignore, 0, t2)
    true_dist = jnp.full_like(p2, smoothing / (V - 1))
    true_dist = true_dist.at[jnp.arange(p2.shape[0]), t_safe].set(confidence)
    soft = beta * true_dist + (1 - beta) * sm
    kl = soft * (jnp.log(soft) - logp)
    kl = jnp.where(ignore[:, None], 0.0, kl)
    total = jnp.sum(~ignore).astype(jnp.float32)
    denom = total if normalize_length else jnp.float32(B)
    return jnp.sum(kl) / denom


if __name__ == "__main__":
    ignore_index = -1
    alpha = 0.1
    key = jax.random.PRNGKey(0)
    k1, k2, k3, k4 = jax.random.split(key, 4)

    # --- case 1: B=2, T=8, V=32, f32, a few ignored positions ----------------
    B, T, V = 2, 8, 32
    preds = jax.random.normal(k1, (B, T, V), dtype=jnp.float32)
    target = jax.random.randint(k2, (B, T), 0, V, dtype=jnp.int32)
    target = target.at[0, -2:].set(ignore_index)
    target = target.at[1, -1].set(ignore_index)

    loss = jax.block_until_ready(
        boost_soft_forward(preds, target, ignore_index=ignore_index,
                           alpha=alpha, normalize_length=True))
    ref = _reference(preds, target, ignore_index=ignore_index,
                     alpha=alpha, normalize_length=True)
    assert jnp.allclose(loss, ref, rtol=5e-4, atol=1e-5), (loss, ref)

    # --- case 2: partial tail block (N=15 vs 16-row block), V not a multiple
    #             of 128, normalize_length=False ------------------------------
    B2, T2, V2 = 3, 5, 33
    preds2 = jax.random.normal(k3, (B2, T2, V2), dtype=jnp.float32)
    target2 = jax.random.randint(k4, (B2, T2), 0, V2, dtype=jnp.int32)
    target2 = target2.at[2, -1].set(ignore_index)

    loss2 = jax.block_until_ready(
        boost_soft_forward(preds2, target2, ignore_index=ignore_index,
                           alpha=alpha, normalize_length=False))
    ref2 = _reference(preds2, target2, ignore_index=ignore_index,
                      alpha=alpha, normalize_length=False)
    assert jnp.allclose(loss2, ref2, rtol=5e-4, atol=1e-5), (loss2, ref2)

    # --- case 3: bf16 inputs (half the HBM bytes; in-kernel f32 cast) --------
    preds_bf16 = preds2.astype(jnp.bfloat16)
    loss3 = jax.block_until_ready(
        boost_soft_forward(preds_bf16, target2, ignore_index=ignore_index,
                           alpha=alpha, normalize_length=True))
    ref3 = _reference(preds_bf16, target2, ignore_index=ignore_index,
                      alpha=alpha, normalize_length=True)
    assert jnp.allclose(loss3, ref3, rtol=2e-3, atol=1e-4), (loss3, ref3)

    print("KERNEL_OK")
</pallas_src>

<mosaic_0001>
module attributes {stable_mosaic.version = 11 : i64} {
  func.func @_boost_soft_kernel(%arg0: i32, %arg1: memref<16x32xf32, #tpu.memory_space<vmem>>, %arg2: memref<16x1xi32, #tpu.memory_space<vmem>>, %arg3: memref<1x1x1xf32, #tpu.memory_space<vmem>>) attributes {dimension_semantics = [#tpu.dimension_semantics<parallel>], iteration_bounds = array<i64: 1>, scalar_prefetch = 0 : i64, scratch_operands = 0 : i64, tpu.core_type = #tpu.core_type<tc>, window_params = [{transform_indices = @transform_0, window_bounds = array<i64: 16, 32>}, {transform_indices = @transform_1, window_bounds = array<i64: 16, 1>}, {transform_indices = @transform_2, window_bounds = array<i64: 1, 1, 1>}]} {
    %c0 = arith.constant 0 : index
    %c0_0 = arith.constant 0 : index
    %0 = vector.load %arg1[%c0, %c0_0] : memref<16x32xf32, #tpu.memory_space<vmem>>, vector<16x32xf32>
    %c0_1 = arith.constant 0 : index
    %c0_2 = arith.constant 0 : index
    %1 = vector.load %arg2[%c0_1, %c0_2] : memref<16x1xi32, #tpu.memory_space<vmem>>, vector<16x1xi32>
    %cst = arith.constant dense<0xFF800000> : vector<16xf32>
    %2 = vector.multi_reduction <maximumf>, %0, %cst [1] : vector<16x32xf32> to vector<16xf32>
    %3 = vector.shape_cast %2 : vector<16xf32> to vector<16x1xf32>
    %4 = vector.broadcast %3 : vector<16x1xf32> to vector<16x32xf32>
    %5 = arith.subf %0, %4 : vector<16x32xf32>
    %6 = math.exp %5 : vector<16x32xf32>
    %cst_3 = arith.constant dense<0.000000e+00> : vector<16xf32>
    %7 = vector.multi_reduction <add>, %6, %cst_3 [1] : vector<16x32xf32> to vector<16xf32>
    %8 = vector.shape_cast %7 : vector<16xf32> to vector<16x1xf32>
    %9 = math.log %8 : vector<16x1xf32>
    %10 = tpu.reciprocal %8 {approx = true} : vector<16x1xf32> -> vector<16x1xf32>
    %cst_4 = arith.constant 5.000000e-02 : f32
    %11 = vector.broadcast %cst_4 : f32 to vector<16x1xf32>
    %12 = arith.mulf %10, %11 : vector<16x1xf32>
    %13 = tpu.iota {dimensions = array<i32: 0>} : vector<16x1xi32>
    %c16_i32 = arith.constant 16 : i32
    %14 = arith.muli %arg0, %c16_i32 : i32
    %15 = vector.broadcast %14 : i32 to vector<16x1xi32>
    %16 = arith.addi %13, %15 : vector<16x1xi32>
    %c-1_i32 = arith.constant -1 : i32
    %17 = vector.broadcast %c-1_i32 : i32 to vector<16x1xi32>
    %18 = arith.cmpi eq, %1, %17 : vector<16x1xi32>
    %c16_i32_5 = arith.constant 16 : i32
    %19 = vector.broadcast %c16_i32_5 : i32 to vector<16x1xi32>
    %20 = arith.cmpi sge, %16, %19 : vector<16x1xi32>
    %21 = arith.ori %18, %20 : vector<16x1xi1>
    %c0_i32 = arith.constant 0 : i32
    %22 = vector.broadcast %c0_i32 : i32 to vector<16x1xi32>
    %23 = arith.select %21, %22, %1 : vector<16x1xi1>, vector<16x1xi32>
    %24 = tpu.iota {dimensions = array<i32: 1>} : vector<16x32xi32>
    %25 = vector.broadcast %23 : vector<16x1xi32> to vector<16x32xi32>
    %26 = arith.cmpi eq, %24, %25 : vector<16x32xi32>
    %cst_6 = arith.constant 8.550000e-01 : f32
    %cst_7 = arith.constant 0.00306451623 : f32
    %27 = vector.broadcast %cst_6 : f32 to vector<16x32xf32>
    %28 = vector.broadcast %cst_7 : f32 to vector<16x32xf32>
    %29 = arith.select %26, %27, %28 : vector<16x32xi1>, vector<16x32xf32>
    %30 = vector.broadcast %12 : vector<16x1xf32> to vector<16x32xf32>
    %31 = arith.mulf %6, %30 : vector<16x32xf32>
    %32 = arith.addf %29, %31 : vector<16x32xf32>
    %33 = math.log %32 : vector<16x32xf32>
    %34 = arith.subf %33, %5 : vector<16x32xf32>
    %35 = arith.mulf %32, %34 : vector<16x32xf32>
    %cst_8 = arith.constant dense<0.000000e+00> : vector<16xf32>
    %36 = vector.multi_reduction <add>, %35, %cst_8 [1] : vector<16x32xf32> to vector<16xf32>
    %37 = vector.shape_cast %36 : vector<16xf32> to vector<16x1xf32>
    %38 = arith.addf %37, %9 : vector<16x1xf32>
    %cst_9 = arith.constant 0.000000e+00 : f32
    %39 = vector.broadcast %cst_9 : f32 to vector<16x1xf32>
    %40 = arith.select %21, %39, %38 : vector<16x1xi1>, vector<16x1xf32>
    %41 = vector.shape_cast %40 : vector<16x1xf32> to vector<1x16x1xf32>
    %cst_10 = arith.constant dense<0.000000e+00> : vector<1xf32>
    %42 = vector.multi_reduction <add>, %41, %cst_10 [1, 2] : vector<1x16x1xf32> to vector<1xf32>
    %43 = vector.shape_cast %42 : vector<1xf32> to vector<1x1x1xf32>
    %44 = vector.extract %43[0, 0, 0] : f32 from vector<1x1x1xf32>
    %45 = vector.broadcast %44 : f32 to vector<1x1x1xf32>
    %c0_11 = arith.constant 0 : index
    %c0_12 = arith.constant 0 : index
    %c0_13 = arith.constant 0 : index
    %46 = vector.load %arg3[%c0_11, %c0_12, %c0_13] : memref<1x1x1xf32, #tpu.memory_space<vmem>>, vector<1x1x1xf32>
    tpu.vector_store %arg3[%c0_11, %c0_12, %c0_13], %45 {strides = array<i32>} : memref<1x1x1xf32, #tpu.memory_space<vmem>>, vector<1x1x1xf32>,
    return
  }
  func.func @transform_0(%arg0: i32) -> (i32, i32) {
    %c0_i32 = arith.constant 0 : i32
    %c0_i32_0 = arith.constant 0 : i32
    return %arg0, %c0_i32 : i32, i32
  }
  func.func @transform_1(%arg0: i32) -> (i32, i32) {
    %c0_i32 = arith.constant 0 : i32
    %c0_i32_0 = arith.constant 0 : i32
    return %arg0, %c0_i32 : i32, i32
  }
  func.func @transform_2(%arg0: i32) -> (i32, i32, i32) {
    %c0_i32 = arith.constant 0 : i32
    %c0_i32_0 = arith.constant 0 : i32
    %c0_i32_1 = arith.constant 0 : i32
    return %arg0, %c0_i32, %c0_i32_0 : i32, i32, i32
  }
}

</mosaic_0001>

<llo_original>
// kernel: tpu_custom_call.1
$region0: #{tpu_custom_call.1}
  #allocation0 [shape = 'u32[]', space=smem, size = 0x4, offset = 0x4, fixed_abs, tag = 'smem constant byte address 0x4 - core index']
  #allocation1 [shape = 'u32[144,128]{1,0:T(1,128)}', space=vmem, size = 0x12000, scoped, tag = 'internal scratch']
  %s0 = inlined_call_operand.vmem [shape: f32[16,32], index: 0, kind: input, shape index: {}]
  %s1 = inlined_call_operand.vmem [shape: s32[16,1], index: 1, kind: input, shape index: {}]
  %s2 = inlined_call_operand.hbm [shape: f32[1,1,1], index: 2, kind: output, shape index: {}]
  %s3 = sld [smem:[#allocation0]]
  $region18: #{tpu_custom_call.1} parent=0
    _
  %s5 = ssub.s32 1, %s3
  %s6 = scalar_select 0, %s5, %s3
  $region1: #{tpu_custom_call.1} parent=0
    #allocation2 [shape = 'u8[512]{0}', space=vmem, size = 0x400, scoped, tag = 'output window, operand 0, single buffered']
    #allocation3 [shape = 's32[1]{0}', space=sflag, size = 0x4, scoped, tag = 'scoped memory for tpu_custom_call.1']
    %7 = vsyncpa [#allocation3], 0
    // Predicated region
    $region2: #{tpu_custom_call.1} parent=1 // pred_check
      _
    $region3: #{tpu_custom_call.1} parent=1 // pred_check_branch
      %9 = sbr.rel (0) target = $region5
    $region4: #{tpu_custom_call.1} parent=1 // pred_region
      _
    $region5: #{tpu_custom_call.1} parent=1 // pred_fallthru
      _
    // Predicated region
    $region6: #{tpu_custom_call.1} parent=1 // pred_check
      _
    $region7: #{tpu_custom_call.1} parent=1 // pred_check_branch
      %11 = sbr.rel (0) target = $region9
    $region8: #{tpu_custom_call.1} parent=1 // pred_region
      _
    $region9: #{tpu_custom_call.1} parent=1 // pred_fallthru
      _
    %v12 = vld [vmem:[%s0] sm:$0xff]
    %v13 = vld [vmem:[%s0 + $0x8] sm:$0xff]
    %v14 = vld [vmem:[%s1] sm:$0xff]
    %v15 = vld [vmem:[%s1 + $0x8] sm:$0xff]
    %vm16 = vcmask 261120
    %v17 = vsel %vm16, %v12, -inf
    %18 = vmax.xlane.f32.xlu0 %v17
    %v19 = vpop.xlane.xlu0 %18
    %v20 = vsel %vm16, %v13, -inf
    %21 = vmax.xlane.f32.xlu0 %v20
    %v22 = vpop.xlane.xlu0 %21
    %v23 = vsub.f32 %v12, %v19
    %v24 = vsub.f32 %v13, %v22
    %v25 = vmul.f32 %v23, 1.442695
    %v26 = vpow.pop %v25
    %v27 = vmul.f32 %v24, 1.442695
    %v28 = vpow.pop %v27
    %v29 = vsel %vm16, %v26, 0.0
    %30 = vadd.xlane.f32.xlu0 %v29
    %v31 = vpop.xlane.xlu0 %30
    %v32 = vsel %vm16, %v28, 0.0
    %33 = vadd.xlane.f32.xlu0 %v32
    %v34 = vpop.xlane.xlu0 %33
    %v35 = vlog2.pop %v31
    %v36 = vmul.f32 %v35, 0.6931472
    %v37 = vlog2.pop %v34
    %v38 = vmul.f32 %v37, 0.6931472
    %v39 = vrcp.pop %v31
    %v40 = vrcp.pop %v34
    %v41 = vmul.f32 %v39, 0.05
    %v42 = vmul.f32 %v40, 0.05
    %v43 = vlaneseq
    %v44 = vshrl.u32 %v43, 7
    %v45 = vadd.s32 %v44, 8
    %s46 = smul.u32 0, 16
    %v47 = vstv %s46
    %v48 = vadd.s32 %v44, %v47
    %v49 = vadd.s32 %v45, %v47
    %vm50 = vcmp.eq.s32.totalorder %v14, 4294967295
    %vm51 = vcmp.eq.s32.totalorder %v15, 4294967295
    %vm52 = vcmp.ge.s32.totalorder %v48, 16
    %vm53 = vcmp.ge.s32.totalorder %v49, 16
    %vm54 = vmor %vm50, %vm52
    %vm55 = vmor %vm51, %vm53
    %v56 = vsel %vm54, 0, %v14
    %v57 = vsel %vm55, 0, %v15
    %v58 = vlaneseq
    %v59 = vand.u32 %v58, 127
    %60 = vset.pattern.permute.xlu0 0
    %61 = vperm.xlu0 %60, %v56
    %v62 = vpop.permute.xlu0 %61
    %63 = vset.pattern.permute.xlu0 0
    %64 = vperm.xlu0 %63, %v57
    %v65 = vpop.permute.xlu0 %64
    %vm66 = vcmp.eq.s32.totalorder %v59, %v62
    %vm67 = vcmp.eq.s32.totalorder %v59, %v65
    %v68 = vsel %vm66, 0.855, 0.0030645162
    %v69 = vsel %vm67, 0.855, 0.0030645162
    %v70 = vmul.f32 %v26, %v41
    %v71 = vmul.f32 %v28, %v42
    %v72 = vadd.f32 %v68, %v70
    %v73 = vadd.f32 %v69, %v71
    %v74 = vlog2.pop %v72
    %v75 = vmul.f32 %v74, 0.6931472
    %v76 = vlog2.pop %v73
    %v77 = vmul.f32 %v76, 0.6931472
    %v78 = vsub.f32 %v75, %v23
    %v79 = vsub.f32 %v77, %v24
    %v80 = vmul.f32 %v72, %v78
    %v81 = vmul.f32 %v73, %v79
    %v82 = vsel %vm16, %v80, 0.0
    %83 = vadd.xlane.f32.xlu0 %v82
    %v84 = vpop.xlane.xlu0 %83
    %v85 = vsel %vm16, %v81, 0.0
    %86 = vadd.xlane.f32.xlu0 %v85
    %v87 = vpop.xlane.xlu0 %86
    %v88 = vadd.f32 %v84, %v36
    %v89 = vadd.f32 %v87, %v38
    %v90 = vsel %vm54, 0.0, %v88
    %v91 = vsel %vm55, 0.0, %v89
    %vm92 = vcmask 7168
    %v93 = vsel %vm92, %v90, 0.0
    %v94 = vsel %vm92, %v91, 0.0
    %v95 = vadd.f32 %v93, %v94
    %96 = vadd.xlane.f32.xlu0 %v95
    %v97 = vpop.xlane.xlu0 %96
    %v98 = vrot.slane %v97, 4
    %v99 = vadd.f32 %v97, %v98
    %v100 = vrot.slane %v99, 2
    %v101 = vadd.f32 %v99, %v100
    %v102 = vrot.slane %v101, 1
    %v103 = vadd.f32 %v101, %v102
    %s104 = vtos %v103
    %v105 = vstv %s104
    %vm106 = vcmask 0
    %107 = vst.msk [vmem:[#allocation2] sm:$0x1] %vm106, %v105
    // Predicated region
    $region10: #{tpu_custom_call.1} parent=1 // pred_check
      _
    $region11: #{tpu_custom_call.1} parent=1 // pred_check_branch
      %109 = sbr.rel (0) target = $region13
    $region12: #{tpu_custom_call.1} parent=1 // pred_region
      %s111 = ssub.s32 16, 16
      %112 = vsyncadd [#allocation3], %s111
      %s114 = sshll.u32 [#allocation2], 4
      %s115 = int_to_ptr.vmem [resolvable:$true] %s114
      %117 = dma.vmem_to_hbm [thread:$0]  %s115, 16, %s2, [#allocation3]
    $region13: #{tpu_custom_call.1} parent=1 // pred_fallthru
      _
    // Predicated region
    $region14: #{tpu_custom_call.1} parent=1 // pred_check
      _
    $region15: #{tpu_custom_call.1} parent=1 // pred_check_branch
      %119 = sbr.rel (0) target = $region17
    $region16: #{tpu_custom_call.1} parent=1 // pred_region
      %120 = dma.done [#allocation3], 16
    $region17: #{tpu_custom_call.1} parent=1 // pred_fallthru
      _
    %121 = vsyncpa [#allocation3], 1

</llo_original>
